<compile_context>
chip_gen: v6e
topology: v6e:2x2x1
jax: 0.10.0
libtpu: 0.0.40
codegen_flags: <defaults>
</compile_context>

<pallas_src>
import jax
import jax.numpy as jnp
from jax import lax
from jax.experimental import pallas as pl
from jax.experimental.pallas import tpu as pltpu

LN_EPS = 1e-5


def _ffn_ln_kernel(x_ref, w1_ref, w2_ref, o_ref, acc_ref):
    # x_ref:   (TM, D)  token tile (resident across the F axis)
    # w1_ref:  (D, TF)  column tile of the first linear weight
    # w2_ref:  (TF, D)  row tile of the second linear weight
    # o_ref:   (TM, D)  output tile (written once, at the last F step)
    # acc_ref: (TM, D)  f32 accumulator scratch
    f = pl.program_id(1)

    @pl.when(f == 0)
    def _init():
        acc_ref[...] = jnp.zeros_like(acc_ref)

    x = x_ref[...]

    # Linear(d_model -> d_ff slice) + ReLU.  Native-dtype MXU operands,
    # f32 accumulation.
    h = jnp.dot(x, w1_ref[...], preferred_element_type=jnp.float32)
    h = jnp.maximum(h, 0.0)

    # Second matmul contribution; feed it in the input dtype (bf16 inputs get
    # the native bf16 MXU path with f32 accumulation; f32 inputs -> no-op).
    acc_ref[...] += jnp.dot(h.astype(x_ref.dtype), w2_ref[...],
                            preferred_element_type=jnp.float32)

    @pl.when(f == pl.num_programs(1) - 1)
    def _finalize():
        # Residual + LayerNorm over d_model (weight=1, bias=0, eps=1e-5), f32.
        y = acc_ref[...] + x.astype(jnp.float32)
        mean = jnp.mean(y, axis=-1, keepdims=True)
        cent = y - mean
        var = jnp.mean(cent * cent, axis=-1, keepdims=True)
        o_ref[...] = (cent * lax.rsqrt(var + LN_EPS)).astype(o_ref.dtype)


def _round_up(x, m):
    return (x + m - 1) // m * m


def _pick_tile(total, candidates):
    for t in candidates:
        if t <= total and total % t == 0:
            return t
    return total  # full extent is always a legal block size


def poswise_ffn(x, w1, w2, *, tm=512, tf=None):
    """x: [B, S, D], w1: [D, F], w2: [F, D] -> [B, S, D]."""
    B, S, D = x.shape
    F = w1.shape[1]
    assert w1.shape == (D, F) and w2.shape == (F, D)

    tokens = B * S
    x2d = x.reshape(tokens, D)

    # Row tile: large (MXU-friendly), multiple of 8 sublanes; pad the token
    # axis with zero rows rather than restricting valid shapes.
    tm = int(_round_up(min(tm, _round_up(tokens, 8)), 8))
    padded_tokens = _round_up(tokens, tm)
    if padded_tokens != tokens:
        x2d = jnp.pad(x2d, ((0, padded_tokens - tokens), (0, 0)))

    # d_ff tile (reduction axis): prefer large multiples of 128.
    if tf is None:
        tf = _pick_tile(F, (2048, 1024, 512, 256, 128))
    assert F % tf == 0
    grid = (padded_tokens // tm, F // tf)

    # VMEM budget: double-buffered IO/weight tiles + accumulator + hidden temp.
    w_itemsize = jnp.dtype(w1.dtype).itemsize
    x_itemsize = jnp.dtype(x.dtype).itemsize
    est_bytes = (2 * (D * tf + tf * D) * w_itemsize   # W1/W2 tiles (2 buffers)
                 + 2 * 2 * tm * D * x_itemsize        # x / out tiles (2 buffers)
                 + tm * D * 4                         # f32 accumulator scratch
                 + tm * tf * 4)                       # hidden tile temporary
    vmem_limit = int(min(max(2 * est_bytes, 32 * 1024 * 1024),
                         96 * 1024 * 1024))

    cost = pl.CostEstimate(
        flops=2 * 2 * tokens * D * F + 8 * tokens * D,
        transcendentals=0,
        bytes_accessed=int(2 * padded_tokens * D * x_itemsize
                           + grid[0] * (w1.size + w2.size) * w_itemsize),
    )

    out2d = pl.pallas_call(
        _ffn_ln_kernel,
        out_shape=jax.ShapeDtypeStruct((padded_tokens, D), x.dtype),
        grid_spec=pltpu.PrefetchScalarGridSpec(
            num_scalar_prefetch=0,
            grid=grid,
            in_specs=[
                pl.BlockSpec((tm, D), lambda i, f: (i, 0)),   # token tile
                pl.BlockSpec((D, tf), lambda i, f: (0, f)),   # W1 column tile
                pl.BlockSpec((tf, D), lambda i, f: (f, 0)),   # W2 row tile
            ],
            out_specs=pl.BlockSpec((tm, D), lambda i, f: (i, 0)),
            scratch_shapes=[pltpu.VMEM((tm, D), jnp.float32)],
        ),
        compiler_params=pltpu.CompilerParams(
            dimension_semantics=("parallel", "arbitrary"),
            vmem_limit_bytes=vmem_limit,
        ),
        cost_estimate=cost,
    )(x2d, w1, w2)

    return out2d[:tokens].reshape(B, S, D)


def reference(x, w1, w2):
    y = jnp.maximum(x @ w1, 0.0) @ w2 + x
    mean = jnp.mean(y, axis=-1, keepdims=True)
    var = jnp.mean((y - mean) ** 2, axis=-1, keepdims=True)
    return (y - mean) * lax.rsqrt(var + LN_EPS)


if __name__ == "__main__":
    # Small shapes consistent with the module: [batch, seq_len, d_model].
    # d_model kept a multiple of 128 so output stores are lane-dense.
    B, S, D, Fdim = 2, 8, 128, 256

    key = jax.random.PRNGKey(0)
    kx, k1, k2 = jax.random.split(key, 3)

    x = jax.random.normal(kx, (B, S, D), dtype=jnp.float32)
    # Deterministic Linear weights (uniform(-1/sqrt(fan_in), 1/sqrt(fan_in)),
    # like PyTorch's default), stored in math layout [in, out].
    w1 = jax.random.uniform(k1, (D, Fdim), dtype=jnp.float32,
                            minval=-1.0, maxval=1.0) / jnp.sqrt(D)
    w2 = jax.random.uniform(k2, (Fdim, D), dtype=jnp.float32,
                            minval=-1.0, maxval=1.0) / jnp.sqrt(Fdim)

    out = jax.block_until_ready(poswise_ffn(x, w1, w2))

    ref = reference(x, w1, w2)
    assert out.shape == (B, S, D)
    err = jnp.max(jnp.abs(out - ref))
    assert jnp.allclose(out, ref, atol=1e-4, rtol=1e-4), f"max err {err}"

    print("KERNEL_OK")
</pallas_src>

<mosaic_0001>
module attributes {stable_mosaic.version = 11 : i64} {
  func.func @_ffn_ln_kernel(%arg0: i32, %arg1: i32, %arg2: memref<16x128xf32, #tpu.memory_space<vmem>>, %arg3: memref<128x256xf32, #tpu.memory_space<vmem>>, %arg4: memref<256x128xf32, #tpu.memory_space<vmem>>, %arg5: memref<16x128xf32, #tpu.memory_space<vmem>>, %arg6: memref<16x128xf32, #tpu.memory_space<vmem>>) attributes {dimension_semantics = [#tpu.dimension_semantics<parallel>, #tpu.dimension_semantics<arbitrary>], iteration_bounds = array<i64: 1, 1>, scalar_prefetch = 0 : i64, scratch_operands = 1 : i64, tpu.core_type = #tpu.core_type<tc>, window_params = [{transform_indices = @transform_0, window_bounds = array<i64: 16, 128>}, {transform_indices = @transform_1, window_bounds = array<i64: 128, 256>}, {transform_indices = @transform_2, window_bounds = array<i64: 256, 128>}, {transform_indices = @transform_3, window_bounds = array<i64: 16, 128>}]} {
    %c0_i32 = arith.constant 0 : i32
    %0 = arith.cmpi eq, %arg1, %c0_i32 : i32
    %1 = arith.extui %0 : i1 to i32
    %c0_i32_0 = arith.constant 0 : i32
    %2 = arith.cmpi ne, %1, %c0_i32_0 : i32
    scf.if %2 {
      %cst_14 = arith.constant 0.000000e+00 : f32
      %16 = vector.broadcast %cst_14 : f32 to vector<16x128xf32>
      %c0_15 = arith.constant 0 : index
      %c0_16 = arith.constant 0 : index
      %17 = vector.load %arg6[%c0_15, %c0_16] : memref<16x128xf32, #tpu.memory_space<vmem>>, vector<16x128xf32>
      tpu.vector_store %arg6[%c0_15, %c0_16], %16 {strides = array<i32>} : memref<16x128xf32, #tpu.memory_space<vmem>>, vector<16x128xf32>,
    } else {
    }
    %c0 = arith.constant 0 : index
    %c0_1 = arith.constant 0 : index
    %3 = vector.load %arg2[%c0, %c0_1] : memref<16x128xf32, #tpu.memory_space<vmem>>, vector<16x128xf32>
    %c0_2 = arith.constant 0 : index
    %c0_3 = arith.constant 0 : index
    %4 = vector.load %arg3[%c0_2, %c0_3] : memref<128x256xf32, #tpu.memory_space<vmem>>, vector<128x256xf32>
    %cst = arith.constant dense<0.000000e+00> : vector<16x256xf32>
    %5 = tpu.matmul %3, %4, %cst {dimension_numbers = #tpu.dot_dimension_numbers<[1], [0], [0], [1], [0, 0, 1, 1], [], []>} : vector<16x128xf32>, vector<128x256xf32>, vector<16x256xf32> -> vector<16x256xf32>
    %cst_4 = arith.constant 0.000000e+00 : f32
    %6 = vector.broadcast %cst_4 : f32 to vector<16x256xf32>
    %7 = arith.maximumf %5, %6 : vector<16x256xf32>
    %c0_5 = arith.constant 0 : index
    %c0_6 = arith.constant 0 : index
    %8 = vector.load %arg6[%c0_5, %c0_6] : memref<16x128xf32, #tpu.memory_space<vmem>>, vector<16x128xf32>
    %c0_7 = arith.constant 0 : index
    %c0_8 = arith.constant 0 : index
    %9 = vector.load %arg4[%c0_7, %c0_8] : memref<256x128xf32, #tpu.memory_space<vmem>>, vector<256x128xf32>
    %cst_9 = arith.constant dense<0.000000e+00> : vector<16x128xf32>
    %10 = tpu.matmul %7, %9, %cst_9 {dimension_numbers = #tpu.dot_dimension_numbers<[1], [0], [0], [1], [0, 0, 1, 1], [], []>} : vector<16x256xf32>, vector<256x128xf32>, vector<16x128xf32> -> vector<16x128xf32>
    %11 = arith.addf %8, %10 : vector<16x128xf32>
    %c0_10 = arith.constant 0 : index
    %c0_11 = arith.constant 0 : index
    %12 = vector.load %arg6[%c0_10, %c0_11] : memref<16x128xf32, #tpu.memory_space<vmem>>, vector<16x128xf32>
    tpu.vector_store %arg6[%c0_10, %c0_11], %11 {strides = array<i32>} : memref<16x128xf32, #tpu.memory_space<vmem>>, vector<16x128xf32>,
    %c0_i32_12 = arith.constant 0 : i32
    %13 = arith.cmpi eq, %arg1, %c0_i32_12 : i32
    %14 = arith.extui %13 : i1 to i32
    %c0_i32_13 = arith.constant 0 : i32
    %15 = arith.cmpi ne, %14, %c0_i32_13 : i32
    scf.if %15 {
      %c0_14 = arith.constant 0 : index
      %c0_15 = arith.constant 0 : index
      %16 = vector.load %arg6[%c0_14, %c0_15] : memref<16x128xf32, #tpu.memory_space<vmem>>, vector<16x128xf32>
      %17 = arith.addf %16, %3 : vector<16x128xf32>
      %cst_16 = arith.constant dense<0.000000e+00> : vector<16xf32>
      %18 = vector.multi_reduction <add>, %17, %cst_16 [1] : vector<16x128xf32> to vector<16xf32>
      %19 = vector.shape_cast %18 : vector<16xf32> to vector<16x1xf32>
      %cst_17 = arith.constant 1.280000e+02 : f32
      %20 = vector.broadcast %cst_17 : f32 to vector<16x1xf32>
      %21 = arith.divf %19, %20 : vector<16x1xf32>
      %22 = vector.broadcast %21 : vector<16x1xf32> to vector<16x128xf32>
      %23 = arith.subf %17, %22 : vector<16x128xf32>
      %24 = arith.mulf %23, %23 : vector<16x128xf32>
      %cst_18 = arith.constant dense<0.000000e+00> : vector<16xf32>
      %25 = vector.multi_reduction <add>, %24, %cst_18 [1] : vector<16x128xf32> to vector<16xf32>
      %26 = vector.shape_cast %25 : vector<16xf32> to vector<16x1xf32>
      %cst_19 = arith.constant 1.280000e+02 : f32
      %27 = vector.broadcast %cst_19 : f32 to vector<16x1xf32>
      %28 = arith.divf %26, %27 : vector<16x1xf32>
      %cst_20 = arith.constant 9.99999974E-6 : f32
      %29 = vector.broadcast %cst_20 : f32 to vector<16x1xf32>
      %30 = arith.addf %28, %29 : vector<16x1xf32>
      %31 = math.rsqrt %30 : vector<16x1xf32>
      %32 = vector.broadcast %31 : vector<16x1xf32> to vector<16x128xf32>
      %33 = arith.mulf %23, %32 : vector<16x128xf32>
      %c0_21 = arith.constant 0 : index
      %c0_22 = arith.constant 0 : index
      %34 = vector.load %arg5[%c0_21, %c0_22] : memref<16x128xf32, #tpu.memory_space<vmem>>, vector<16x128xf32>
      tpu.vector_store %arg5[%c0_21, %c0_22], %33 {strides = array<i32>} : memref<16x128xf32, #tpu.memory_space<vmem>>, vector<16x128xf32>,
    } else {
    }
    return
  }
  func.func @transform_0(%arg0: i32, %arg1: i32) -> (i32, i32) {
    %c0_i32 = arith.constant 0 : i32
    %c0_i32_0 = arith.constant 0 : i32
    return %arg0, %c0_i32 : i32, i32
  }
  func.func @transform_1(%arg0: i32, %arg1: i32) -> (i32, i32) {
    %c0_i32 = arith.constant 0 : i32
    %c0_i32_0 = arith.constant 0 : i32
    return %c0_i32, %arg1 : i32, i32
  }
  func.func @transform_2(%arg0: i32, %arg1: i32) -> (i32, i32) {
    %c0_i32 = arith.constant 0 : i32
    %c0_i32_0 = arith.constant 0 : i32
    return %arg1, %c0_i32 : i32, i32
  }
  func.func @transform_3(%arg0: i32, %arg1: i32) -> (i32, i32) {
    %c0_i32 = arith.constant 0 : i32
    %c0_i32_0 = arith.constant 0 : i32
    return %arg0, %c0_i32 : i32, i32
  }
}

</mosaic_0001>

<llo_original>
// kernel: tpu_custom_call.1
$region0: #{tpu_custom_call.1}
  #allocation0 [shape = 'u32[]', space=smem, size = 0x4, offset = 0x4, fixed_abs, tag = 'smem constant byte address 0x4 - core index']
  #allocation1 [shape = 'u32[144,128]{1,0:T(1,128)}', space=vmem, size = 0x12000, scoped, tag = 'internal scratch']
  #allocation2 [shape = 'f32[16,128]{1,0:T(8,128)}', space=vmem, size = 0x2000, scoped, tag = 'scratch operand']
  %s0 = inlined_call_operand.hbm [shape: f32[16,128], index: 0, kind: input, shape index: {}]
  %s1 = inlined_call_operand.hbm [shape: f32[128,256], index: 1, kind: input, shape index: {}]
  %s2 = inlined_call_operand.hbm [shape: f32[256,128], index: 2, kind: input, shape index: {}]
  %s3 = inlined_call_operand.hbm [shape: f32[16,128], index: 3, kind: output, shape index: {}]
  %s4 = sld [smem:[#allocation0]]
  $region42: #{tpu_custom_call.1} parent=0
    _
  %s6 = ssub.s32 1, %s4
  %s7 = scalar_select 0, %s6, %s4
  $region1: #{tpu_custom_call.1} parent=0
    #allocation3 [shape = 'u8[8192]{0}', space=vmem, size = 0x2000, scoped, tag = 'input window, operand 0, single buffered']
    #allocation4 [shape = 's32[1]{0}', space=sflag, size = 0x4, scoped, tag = 'scoped memory for tpu_custom_call.1']
    #allocation5 [shape = 's32[1]{0}', space=sflag, size = 0x4, scoped, tag = 'scoped memory for tpu_custom_call.1']
    #allocation6 [shape = 'u8[131072]{0}', space=vmem, size = 0x20000, scoped, tag = 'input window, operand 1, single buffered']
    #allocation7 [shape = 's32[1]{0}', space=sflag, size = 0x4, scoped, tag = 'scoped memory for tpu_custom_call.1']
    #allocation8 [shape = 'u8[131072]{0}', space=vmem, size = 0x20000, scoped, tag = 'input window, operand 2, single buffered']
    #allocation9 [shape = 'u8[8192]{0}', space=vmem, size = 0x2000, scoped, tag = 'output window, operand 0, single buffered']
    %8 = vsyncpa [#allocation4], 0
    %9 = vsyncpa [#allocation7], 0
    %10 = vsyncpa [#allocation5], 0
    // Predicated region
    $region2: #{tpu_custom_call.1} parent=1 // pred_check
      _
    $region3: #{tpu_custom_call.1} parent=1 // pred_check_branch
      %12 = sbr.rel (0) target = $region5
    $region4: #{tpu_custom_call.1} parent=1 // pred_region
      %s14 = ssub.s32 256, 256
      %15 = vsyncadd [#allocation4], %s14
      %s16 = sshll.u32 [#allocation3], 4
      %s17 = int_to_ptr.vmem [resolvable:$true] %s16
      %22 = dma.hbm_to_vmem [thread:$0]  %s0, 256, %s17, [#allocation4], 128, 128, 8
    $region5: #{tpu_custom_call.1} parent=1 // pred_fallthru
      _
    // Predicated region
    $region6: #{tpu_custom_call.1} parent=1 // pred_check
      _
    $region7: #{tpu_custom_call.1} parent=1 // pred_check_branch
      %24 = sbr.rel (0) target = $region9
    $region8: #{tpu_custom_call.1} parent=1 // pred_region
      %s26 = ssub.s32 4096, 4096
      %27 = vsyncadd [#allocation7], %s26
      %s28 = sshll.u32 [#allocation6], 4
      %s29 = int_to_ptr.vmem [resolvable:$true] %s28
      %34 = dma.hbm_to_vmem [thread:$0]  %s1, 4096, %s29, [#allocation7], 256, 256, 16
    $region9: #{tpu_custom_call.1} parent=1 // pred_fallthru
      _
    // Predicated region
    $region10: #{tpu_custom_call.1} parent=1 // pred_check
      _
    $region11: #{tpu_custom_call.1} parent=1 // pred_check_branch
      %36 = sbr.rel (0) target = $region13
    $region12: #{tpu_custom_call.1} parent=1 // pred_region
      %s38 = ssub.s32 4096, 4096
      %39 = vsyncadd [#allocation7], %s38
      %s40 = sshll.u32 [#allocation8], 4
      %s41 = int_to_ptr.vmem [resolvable:$true] %s40
      %46 = dma.hbm_to_vmem [thread:$0]  %s2, 4096, %s41, [#allocation7], 128, 128, 8
    $region13: #{tpu_custom_call.1} parent=1 // pred_fallthru
      _
    // Predicated region
    $region14: #{tpu_custom_call.1} parent=1 // pred_check
      _
    $region15: #{tpu_custom_call.1} parent=1 // pred_check_branch
      %48 = sbr.rel (0) target = $region17
    $region16: #{tpu_custom_call.1} parent=1 // pred_region
      %49 = dma.done [#allocation4], 256
    $region17: #{tpu_custom_call.1} parent=1 // pred_fallthru
      _
    // Predicated region
    $region18: #{tpu_custom_call.1} parent=1 // pred_check
      _
    $region19: #{tpu_custom_call.1} parent=1 // pred_check_branch
      %51 = sbr.rel (0) target = $region21
    $region20: #{tpu_custom_call.1} parent=1 // pred_region
      %52 = dma.done [#allocation7], 4096
    $region21: #{tpu_custom_call.1} parent=1 // pred_fallthru
      _
    // Predicated region
    $region22: #{tpu_custom_call.1} parent=1 // pred_check
      _
    $region23: #{tpu_custom_call.1} parent=1 // pred_check_branch
      %54 = sbr.rel (0) target = $region25
    $region24: #{tpu_custom_call.1} parent=1 // pred_region
      %55 = dma.done [#allocation7], 4096
    $region25: #{tpu_custom_call.1} parent=1 // pred_fallthru
      _
    %p56 = scmp.eq.s32.totalorder 0, 0
    // Predicated region
    $region26: #{tpu_custom_call.1} parent=1 // pred_check
      %p57 = pneg %p56
    $region27: #{tpu_custom_call.1} parent=1 // pred_check_branch
      %59 = sbr.rel (%p57) target = $region29
    $region28: #{tpu_custom_call.1} parent=1 // pred_region
      %60 = vst [vmem:[#allocation2] sm:$0xff] 0.0
      %61 = vst [vmem:[#allocation2 + $0x8] sm:$0xff] 0.0
    $region29: #{tpu_custom_call.1} parent=1 // pred_fallthru
      _
    %v62 = vld [vmem:[#allocation3] sm:$0xff]
    %v63 = vld [vmem:[#allocation3 + $0x8] sm:$0xff]
    %v64 = vld [vmem:[#allocation6] sm:$0xff]
    %v65 = vld [vmem:[#allocation6 + $0x8] sm:$0xff]
    %v66 = vld [vmem:[#allocation6 + $0x10] sm:$0xff]
    %v67 = vld [vmem:[#allocation6 + $0x18] sm:$0xff]
    %v68 = vld [vmem:[#allocation6 + $0x20] sm:$0xff]
    %v69 = vld [vmem:[#allocation6 + $0x28] sm:$0xff]
    %v70 = vld [vmem:[#allocation6 + $0x30] sm:$0xff]
    %v71 = vld [vmem:[#allocation6 + $0x38] sm:$0xff]
    %v72 = vld [vmem:[#allocation6 + $0x40] sm:$0xff]
    %v73 = vld [vmem:[#allocation6 + $0x48] sm:$0xff]
    %v74 = vld [vmem:[#allocation6 + $0x50] sm:$0xff]
    %v75 = vld [vmem:[#allocation6 + $0x58] sm:$0xff]
    %v76 = vld [vmem:[#allocation6 + $0x60] sm:$0xff]
    %v77 = vld [vmem:[#allocation6 + $0x68] sm:$0xff]
    %v78 = vld [vmem:[#allocation6 + $0x70] sm:$0xff]
    %v79 = vld [vmem:[#allocation6 + $0x78] sm:$0xff]
    %v80 = vld [vmem:[#allocation6 + $0x80] sm:$0xff]
    %v81 = vld [vmem:[#allocation6 + $0x88] sm:$0xff]
    %v82 = vld [vmem:[#allocation6 + $0x90] sm:$0xff]
    %v83 = vld [vmem:[#allocation6 + $0x98] sm:$0xff]
    %v84 = vld [vmem:[#allocation6 + $0xa0] sm:$0xff]
    %v85 = vld [vmem:[#allocation6 + $0xa8] sm:$0xff]
    %v86 = vld [vmem:[#allocation6 + $0xb0] sm:$0xff]
    %v87 = vld [vmem:[#allocation6 + $0xb8] sm:$0xff]
    %v88 = vld [vmem:[#allocation6 + $0xc0] sm:$0xff]
    %v89 = vld [vmem:[#allocation6 + $0xc8] sm:$0xff]
    %v90 = vld [vmem:[#allocation6 + $0xd0] sm:$0xff]
    %v91 = vld [vmem:[#allocation6 + $0xd8] sm:$0xff]
    %v92 = vld [vmem:[#allocation6 + $0xe0] sm:$0xff]
    %v93 = vld [vmem:[#allocation6 + $0xe8] sm:$0xff]
    %v94 = vld [vmem:[#allocation6 + $0xf0] sm:$0xff]
    %v95 = vld [vmem:[#allocation6 + $0xf8] sm:$0xff]
    %96 = vmatprep.subr.mxu0 %v95
    %97 = vmatpush1.msra.mxu0 %v94
    %98 = vmatprep.subr.mxu0 %v93
    %99 = vmatpush1.msra.mxu0 %v92
    %100 = vmatprep.subr.mxu0 %v91
    %101 = vmatpush1.msra.mxu0 %v90
    %102 = vmatprep.subr.mxu0 %v89
    %103 = vmatpush1.msra.mxu0 %v88
    %104 = vmatprep.subr.mxu0 %v87
    %105 = vmatpush1.msra.mxu0 %v86
    %106 = vmatprep.subr.mxu0 %v85
    %107 = vmatpush1.msra.mxu0 %v84
    %108 = vmatprep.subr.mxu0 %v83
    %109 = vmatpush1.msra.mxu0 %v82
    %110 = vmatprep.subr.mxu0 %v81
    %111 = vmatpush1.msra.mxu0 %v80
    %112 = vmatprep.subr.mxu0 %v79
    %113 = vmatpush1.msra.mxu0 %v78
    %114 = vmatprep.subr.mxu0 %v77
    %115 = vmatpush1.msra.mxu0 %v76
    %116 = vmatprep.subr.mxu0 %v75
    %117 = vmatpush1.msra.mxu0 %v74
    %118 = vmatprep.subr.mxu0 %v73
    %119 = vmatpush1.msra.mxu0 %v72
    %120 = vmatprep.subr.mxu0 %v71
    %121 = vmatpush1.msra.mxu0 %v70
    %122 = vmatprep.subr.mxu0 %v69
    %123 = vmatpush1.msra.mxu0 %v68
    %124 = vmatprep.subr.mxu0 %v67
    %125 = vmatpush1.msra.mxu0 %v66
    %126 = vmatprep.subr.mxu0 %v65
    %127 = vmatpush1.msra.mxu0 %v64
    %128 = vmatprep.subr.mxu0 0.0
    %129 = vmatpush2.msra.mxu0 0.0
    %130 = vmatprep.subr.mxu0 0.0
    %131 = vmatpush2.msra.mxu0 0.0
    %132 = vmatprep.subr.mxu0 0.0
    %133 = vmatpush2.msra.mxu0 0.0
    %134 = vmatprep.subr.mxu0 0.0
    %135 = vmatpush2.msra.mxu0 0.0
    %136 = vmatprep.subr.mxu0 0.0
    %137 = vmatpush2.msra.mxu0 0.0
    %138 = vmatprep.subr.mxu0 0.0
    %139 = vmatpush2.msra.mxu0 0.0
    %140 = vmatprep.subr.mxu0 0.0
    %141 = vmatpush2.msra.mxu0 0.0
    %142 = vmatprep.subr.mxu0 0.0
    %143 = vmatpush2.msra.mxu0 0.0
    %144 = vmatprep.subr.mxu0 0.0
    %145 = vmatpush2.msra.mxu0 0.0
    %146 = vmatprep.subr.mxu0 0.0
    %147 = vmatpush2.msra.mxu0 0.0
    %148 = vmatprep.subr.mxu0 0.0
    %149 = vmatpush2.msra.mxu0 0.0
    %150 = vmatprep.subr.mxu0 0.0
    %151 = vmatpush2.msra.mxu0 0.0
    %152 = vmatprep.subr.mxu0 0.0
    %153 = vmatpush2.msra.mxu0 0.0
    %154 = vmatprep.subr.mxu0 0.0
    %155 = vmatpush2.msra.mxu0 0.0
    %156 = vmatprep.subr.mxu0 0.0
    %157 = vmatpush2.msra.mxu0 0.0
    %158 = vmatprep.subr.mxu0 0.0
    %159 = vmatpush2.msra.mxu0 0.0
    %160 = vmatprep.mubr.f32.mxu0 0.0
    %161 = vmatmul.mubr.f32.gmra.mxu0 %v62
    %v162 = vpop.f32.mrf.mxu0
    %v163 = vadd.f32 0.0, %v162
    %v164 = vpop.f32.mrf.mxu0
    %v165 = vadd.f32 0.0, %v164
    %166 = vmatprep.mubr.f32.mxu0 0.0
    %167 = vmatmul.mubr.f32.gmra.mxu0 %v63
    %v168 = vpop.f32.mrf.mxu0
    %v169 = vadd.f32 0.0, %v168
    %v170 = vpop.f32.mrf.mxu0
    %v171 = vadd.f32 0.0, %v170
    %172 = vdwg.mxu0
    %v173 = vmax.f32 %v163, 0.0
    %v174 = vmax.f32 %v165, 0.0
    %v175 = vmax.f32 %v169, 0.0
    %v176 = vmax.f32 %v171, 0.0
    %v177 = vld [vmem:[#allocation2] sm:$0xff]
    %v178 = vld [vmem:[#allocation2 + $0x8] sm:$0xff]
    %v179 = vld [vmem:[#allocation8] sm:$0xff]
    %v180 = vld [vmem:[#allocation8 + $0x8] sm:$0xff]
    %v181 = vld [vmem:[#allocation8 + $0x10] sm:$0xff]
    %v182 = vld [vmem:[#allocation8 + $0x18] sm:$0xff]
    %v183 = vld [vmem:[#allocation8 + $0x20] sm:$0xff]
    %v184 = vld [vmem:[#allocation8 + $0x28] sm:$0xff]
    %v185 = vld [vmem:[#allocation8 + $0x30] sm:$0xff]
    %v186 = vld [vmem:[#allocation8 + $0x38] sm:$0xff]
    %v187 = vld [vmem:[#allocation8 + $0x40] sm:$0xff]
    %v188 = vld [vmem:[#allocation8 + $0x48] sm:$0xff]
    %v189 = vld [vmem:[#allocation8 + $0x50] sm:$0xff]
    %v190 = vld [vmem:[#allocation8 + $0x58] sm:$0xff]
    %v191 = vld [vmem:[#allocation8 + $0x60] sm:$0xff]
    %v192 = vld [vmem:[#allocation8 + $0x68] sm:$0xff]
    %v193 = vld [vmem:[#allocation8 + $0x70] sm:$0xff]
    %v194 = vld [vmem:[#allocation8 + $0x78] sm:$0xff]
    %v195 = vld [vmem:[#allocation8 + $0x80] sm:$0xff]
    %v196 = vld [vmem:[#allocation8 + $0x88] sm:$0xff]
    %v197 = vld [vmem:[#allocation8 + $0x90] sm:$0xff]
    %v198 = vld [vmem:[#allocation8 + $0x98] sm:$0xff]
    %v199 = vld [vmem:[#allocation8 + $0xa0] sm:$0xff]
    %v200 = vld [vmem:[#allocation8 + $0xa8] sm:$0xff]
    %v201 = vld [vmem:[#allocation8 + $0xb0] sm:$0xff]
    %v202 = vld [vmem:[#allocation8 + $0xb8] sm:$0xff]
    %v203 = vld [vmem:[#allocation8 + $0xc0] sm:$0xff]
    %v204 = vld [vmem:[#allocation8 + $0xc8] sm:$0xff]
    %v205 = vld [vmem:[#allocation8 + $0xd0] sm:$0xff]
    %v206 = vld [vmem:[#allocation8 + $0xd8] sm:$0xff]
    %v207 = vld [vmem:[#allocation8 + $0xe0] sm:$0xff]
    %v208 = vld [vmem:[#allocation8 + $0xe8] sm:$0xff]
    %v209 = vld [vmem:[#allocation8 + $0xf0] sm:$0xff]
    %v210 = vld [vmem:[#allocation8 + $0xf8] sm:$0xff]
    %211 = vmatprep.subr.mxu0 0.0
    %212 = vmatpush1.msra.mxu0 %v194
    %213 = vmatprep.subr.mxu0 0.0
    %214 = vmatpush1.msra.mxu0 %v193
    %215 = vmatprep.subr.mxu0 0.0
    %216 = vmatpush1.msra.mxu0 %v192
    %217 = vmatprep.subr.mxu0 0.0
    %218 = vmatpush1.msra.mxu0 %v191
    %219 = vmatprep.subr.mxu0 0.0
    %220 = vmatpush1.msra.mxu0 %v190
    %221 = vmatprep.subr.mxu0 0.0
    %222 = vmatpush1.msra.mxu0 %v189
    %223 = vmatprep.subr.mxu0 0.0
    %224 = vmatpush1.msra.mxu0 %v188
    %225 = vmatprep.subr.mxu0 0.0
    %226 = vmatpush1.msra.mxu0 %v187
    %227 = vmatprep.subr.mxu0 0.0
    %228 = vmatpush1.msra.mxu0 %v186
    %229 = vmatprep.subr.mxu0 0.0
    %230 = vmatpush1.msra.mxu0 %v185
    %231 = vmatprep.subr.mxu0 0.0
    %232 = vmatpush1.msra.mxu0 %v184
    %233 = vmatprep.subr.mxu0 0.0
    %234 = vmatpush1.msra.mxu0 %v183
    %235 = vmatprep.subr.mxu0 0.0
    %236 = vmatpush1.msra.mxu0 %v182
    %237 = vmatprep.subr.mxu0 0.0
    %238 = vmatpush1.msra.mxu0 %v181
    %239 = vmatprep.subr.mxu0 0.0
    %240 = vmatpush1.msra.mxu0 %v180
    %241 = vmatprep.subr.mxu0 0.0
    %242 = vmatpush1.msra.mxu0 %v179
    %243 = vmatprep.subr.mxu0 0.0
    %244 = vmatpush2.msra.mxu0 %v210
    %245 = vmatprep.subr.mxu0 0.0
    %246 = vmatpush2.msra.mxu0 %v209
    %247 = vmatprep.subr.mxu0 0.0
    %248 = vmatpush2.msra.mxu0 %v208
    %249 = vmatprep.subr.mxu0 0.0
    %250 = vmatpush2.msra.mxu0 %v207
    %251 = vmatprep.subr.mxu0 0.0
    %252 = vmatpush2.msra.mxu0 %v206
    %253 = vmatprep.subr.mxu0 0.0
    %254 = vmatpush2.msra.mxu0 %v205
    %255 = vmatprep.subr.mxu0 0.0
    %256 = vmatpush2.msra.mxu0 %v204
    %257 = vmatprep.subr.mxu0 0.0
    %258 = vmatpush2.msra.mxu0 %v203
    %259 = vmatprep.subr.mxu0 0.0
    %260 = vmatpush2.msra.mxu0 %v202
    %261 = vmatprep.subr.mxu0 0.0
    %262 = vmatpush2.msra.mxu0 %v201
    %263 = vmatprep.subr.mxu0 0.0
    %264 = vmatpush2.msra.mxu0 %v200
    %265 = vmatprep.subr.mxu0 0.0
    %266 = vmatpush2.msra.mxu0 %v199
    %267 = vmatprep.subr.mxu0 0.0
    %268 = vmatpush2.msra.mxu0 %v198
    %269 = vmatprep.subr.mxu0 0.0
    %270 = vmatpush2.msra.mxu0 %v197
    %271 = vmatprep.subr.mxu0 0.0
    %272 = vmatpush2.msra.mxu0 %v196
    %273 = vmatprep.subr.mxu0 0.0
    %274 = vmatpush2.msra.mxu0 %v195
    %275 = vmatprep.mubr.f32.mxu0 %v174
    %276 = vmatmul.mubr.f32.gmra.mxu0 %v173
    %v277 = vpop.f32.mrf.mxu0
    %v278 = vadd.f32 0.0, %v277
    %v279 = vpop.f32.mrf.mxu0
    %280 = vmatprep.mubr.f32.mxu0 %v176
    %281 = vmatmul.mubr.f32.gmra.mxu0 %v175
    %v282 = vpop.f32.mrf.mxu0
    %v283 = vadd.f32 0.0, %v282
    %v284 = vpop.f32.mrf.mxu0
    %285 = vdwg.mxu0
    %v286 = vadd.f32 %v177, %v278
    %v287 = vadd.f32 %v178, %v283
    %288 = vst [vmem:[#allocation2] sm:$0xff] %v286
    %289 = vst [vmem:[#allocation2 + $0x8] sm:$0xff] %v287
    // Predicated region
    $region30: #{tpu_custom_call.1} parent=1 // pred_check
      %p290 = pneg %p56
    $region31: #{tpu_custom_call.1} parent=1 // pred_check_branch
      %292 = sbr.rel (%p290) target = $region33
    $region32: #{tpu_custom_call.1} parent=1 // pred_region
      %v293 = vld [vmem:[#allocation2] sm:$0xff]
      %v294 = vld [vmem:[#allocation2 + $0x8] sm:$0xff]
      %v295 = vadd.f32 %v293, %v62
      %v296 = vadd.f32 %v294, %v63
      %297 = vadd.xlane.f32.xlu0 %v295
      %v298 = vpop.xlane.xlu0 %297
      %299 = vadd.xlane.f32.xlu0 %v296
      %v300 = vpop.xlane.xlu0 %299
      %v301 = vrcp.pop 128.0
      %v302 = vmul.f32 %v298, %v301
      %v303 = vmul.f32 %v300, %v301
      %v304 = vsub.f32 %v295, %v302
      %v305 = vsub.f32 %v296, %v303
      %v306 = vmul.f32 %v304, %v304
      %v307 = vmul.f32 %v305, %v305
      %308 = vadd.xlane.f32.xlu0 %v306
      %v309 = vpop.xlane.xlu0 %308
      %310 = vadd.xlane.f32.xlu0 %v307
      %v311 = vpop.xlane.xlu0 %310
      %v312 = vmul.f32 %v309, %v301
      %v313 = vmul.f32 %v311, %v301
      %v314 = vadd.f32 %v312, 1e-05
      %v315 = vadd.f32 %v313, 1e-05
      %v316 = vrsqrt.pop %v314
      %v317 = vrsqrt.pop %v315
      %v318 = vmul.f32 %v304, %v316
      %v319 = vmul.f32 %v305, %v317
      %320 = vst [vmem:[#allocation9] sm:$0xff] %v318
      %321 = vst [vmem:[#allocation9 + $0x8] sm:$0xff] %v319
    $region33: #{tpu_custom_call.1} parent=1 // pred_fallthru
      _
    // Predicated region
    $region34: #{tpu_custom_call.1} parent=1 // pred_check
      _
    $region35: #{tpu_custom_call.1} parent=1 // pred_check_branch
      %323 = sbr.rel (0) target = $region37
    $region36: #{tpu_custom_call.1} parent=1 // pred_region
      %s325 = ssub.s32 256, 256
      %326 = vsyncadd [#allocation5], %s325
      %s327 = sshll.u32 [#allocation9], 4
      %s328 = int_to_ptr.vmem [resolvable:$true] %s327
      %333 = dma.vmem_to_hbm [thread:$0]  %s328, 256, %s3, [#allocation5], 128, 128, 8
    $region37: #{tpu_custom_call.1} parent=1 // pred_fallthru
      _
    // Predicated region
    $region38: #{tpu_custom_call.1} parent=1 // pred_check
      _
    $region39: #{tpu_custom_call.1} parent=1 // pred_check_branch
      %335 = sbr.rel (0) target = $region41
    $region40: #{tpu_custom_call.1} parent=1 // pred_region
      %336 = dma.done [#allocation5], 256
    $region41: #{tpu_custom_call.1} parent=1 // pred_fallthru
      _
    %337 = vsyncpa [#allocation4], 1
    %338 = vsyncpa [#allocation7], 1
    %339 = vsyncpa [#allocation5], 1

</llo_original>
